<compile_context>
chip_gen: v5e
topology: v5e:2x2
jax: 0.10.0
libtpu: 0.0.40
codegen_flags: <defaults>
</compile_context>

<pallas_src>
import functools

import jax
import jax.numpy as jnp
from jax import lax
from jax.experimental import pallas as pl
from jax.experimental.pallas import tpu as pltpu


def _mha_kernel(x_ref, wqkv_ref, wo_ref, bqkv_ref, bo_ref, o_ref, ctx_ref,
                *, num_heads, head_dim, inv_scale):
    """Grid = (B,).

    x_ref    : (1, S, E)  f32
    wqkv_ref : (E, 3E)    bf16   (pre-transposed: qkv = x @ Wqkv)
    wo_ref   : (E, E)     bf16   (pre-transposed: out = ctx @ Wo)
    bqkv_ref : (1, 3E)    f32
    bo_ref   : (1, E)     f32
    o_ref    : (1, S, E)  f32
    ctx_ref  : (S, E)     bf16   VMEM scratch (per-head context slots)
    """
    S = x_ref.shape[1]
    E = num_heads * head_dim

    x = x_ref[0].astype(jnp.bfloat16)                                    # (S, E)

    # Fused QKV projection: one lane-dense (S,E)@(E,3E) GEMM, f32 accumulate.
    qkv = jnp.dot(x, wqkv_ref[...], preferred_element_type=jnp.float32) + bqkv_ref[...]

    # Fold the softmax scale into Q once (S*E muls instead of H*S^2).
    q16 = (qkv[:, :E] * jnp.float32(inv_scale)).astype(jnp.bfloat16)
    k16 = qkv[:, E:2 * E].astype(jnp.bfloat16)
    v16 = qkv[:, 2 * E:].astype(jnp.bfloat16)

    # Causal mask, built once per body and reused by every head.
    row = lax.broadcasted_iota(jnp.int32, (S, S), 0)
    col = lax.broadcasted_iota(jnp.int32, (S, S), 1)
    causal = col <= row
    neg_big = jnp.float32(-1e30)

    for h in range(num_heads):                                           # static unroll
        sl = slice(h * head_dim, (h + 1) * head_dim)
        qh = q16[:, sl]                                                  # (S, hd)
        kh = k16[:, sl]                                                  # (S, hd)
        vh = v16[:, sl]                                                  # (S, hd)

        # scores = qh @ kh^T, contracting last dims (no materialized transpose).
        scores = lax.dot_general(
            qh, kh, dimension_numbers=(((1,), (1,)), ((), ())),
            preferred_element_type=jnp.float32)                          # (S, S) f32
        scores = jnp.where(causal, scores, neg_big)

        # Softmax with DEFERRED normalization: normalize the (S, hd) context,
        # not the (S, S) probabilities.
        m = jnp.max(scores, axis=-1, keepdims=True)
        p = jnp.exp(scores - m)                                          # (S, S) f32
        denom = jnp.sum(p, axis=-1, keepdims=True)                       # (S, 1) f32
        ctx_h = jnp.dot(p.astype(jnp.bfloat16), vh,
                        preferred_element_type=jnp.float32)              # (S, hd) f32
        ctx_h = ctx_h * pl.reciprocal(denom, approx=True)                # EUP slot

        # Write immediately to VMEM scratch: bounds this head's (S,S) live range
        # and avoids a late H-way lane concatenate.
        ctx_ref[:, sl] = ctx_h.astype(jnp.bfloat16)

    # Output projection: one lane-dense (S,E)@(E,E) GEMM.
    out = jnp.dot(ctx_ref[...], wo_ref[...],
                  preferred_element_type=jnp.float32) + bo_ref[...]
    o_ref[0] = out.astype(o_ref.dtype)


def multihead_attention(x, params, num_heads):
    """x: (B, S, E) float32.  params: PyTorch-style Linear weights (out,in) / biases."""
    B, S, E = x.shape
    hd = E // num_heads
    inv_scale = 1.0 / (float(hd) ** 0.5)

    # PyTorch Linear: y = x @ W.T + b with W of shape (out, in).
    # Pre-transpose to (in, out), fuse Q/K/V, and cast weights to bf16 for the MXU.
    wqkv = jnp.concatenate(
        [params["Wq"].T, params["Wk"].T, params["Wv"].T], axis=1).astype(jnp.bfloat16)
    bqkv = jnp.concatenate(
        [params["bq"], params["bk"], params["bv"]]).reshape(1, 3 * E).astype(jnp.float32)
    wo = params["Wo"].T.astype(jnp.bfloat16)
    bo = params["bo"].reshape(1, E).astype(jnp.float32)

    kernel = functools.partial(_mha_kernel, num_heads=num_heads, head_dim=hd,
                               inv_scale=inv_scale)

    return pl.pallas_call(
        kernel,
        out_shape=jax.ShapeDtypeStruct((B, S, E), jnp.float32),
        grid_spec=pltpu.PrefetchScalarGridSpec(
            num_scalar_prefetch=0,
            grid=(B,),
            in_specs=[
                pl.BlockSpec((1, S, E), lambda b: (b, 0, 0)),        # x
                pl.BlockSpec((E, 3 * E), lambda b: (0, 0)),          # Wqkv^T (bf16)
                pl.BlockSpec((E, E), lambda b: (0, 0)),              # Wo^T   (bf16)
                pl.BlockSpec((1, 3 * E), lambda b: (0, 0)),          # bqkv   (f32)
                pl.BlockSpec((1, E), lambda b: (0, 0)),              # bo     (f32)
            ],
            out_specs=pl.BlockSpec((1, S, E), lambda b: (b, 0, 0)),
            scratch_shapes=[pltpu.VMEM((S, E), jnp.bfloat16)],       # per-head ctx
        ),
        compiler_params=pltpu.CompilerParams(
            dimension_semantics=("parallel",),
            vmem_limit_bytes=32 * 1024 * 1024),
    )(x, wqkv, wo, bqkv, bo)


def _reference(x, params, num_heads):
    """Pure-JAX f32 reference matching the PyTorch forward (eval-mode dropout)."""
    B, S, E = x.shape
    hd = E // num_heads
    scale = float(hd) ** 0.5
    q = x @ params["Wq"].T + params["bq"]
    k = x @ params["Wk"].T + params["bk"]
    v = x @ params["Wv"].T + params["bv"]
    q = q.reshape(B, S, num_heads, hd).transpose(0, 2, 1, 3)
    k = k.reshape(B, S, num_heads, hd).transpose(0, 2, 1, 3)
    v = v.reshape(B, S, num_heads, hd).transpose(0, 2, 1, 3)
    scores = jnp.einsum("bhqd,bhkd->bhqk", q, k) / scale
    mask = jnp.tril(jnp.ones((S, S)))
    scores = jnp.where(mask[None, None] == 0, -jnp.inf, scores)
    attn = jax.nn.softmax(scores, axis=-1)
    ctx = jnp.einsum("bhqk,bhkd->bhqd", attn, v)
    ctx = ctx.transpose(0, 2, 1, 3).reshape(B, S, E)
    return ctx @ params["Wo"].T + params["bo"]


if __name__ == "__main__":
    # Small config consistent with the module: E divisible by H.
    B, S, E, H = 2, 8, 32, 4

    key = jax.random.PRNGKey(0)
    ks = jax.random.split(key, 9)
    bound = 1.0 / (E ** 0.5)  # PyTorch Linear default init range

    def uni(k, shape):
        return jax.random.uniform(k, shape, jnp.float32, -bound, bound)

    params = {
        "Wq": uni(ks[0], (E, E)), "bq": uni(ks[1], (E,)),
        "Wk": uni(ks[2], (E, E)), "bk": uni(ks[3], (E,)),
        "Wv": uni(ks[4], (E, E)), "bv": uni(ks[5], (E,)),
        "Wo": uni(ks[6], (E, E)), "bo": uni(ks[7], (E,)),
    }
    x = jax.random.normal(ks[8], (B, S, E), jnp.float32)

    out = multihead_attention(x, params, H)
    out = jax.block_until_ready(out)

    ref = _reference(x, params, H)
    assert out.shape == (B, S, E)
    # bf16 MXU operands + approx reciprocal -> compare with bf16-appropriate tolerance.
    assert jnp.allclose(out, ref, atol=5e-2, rtol=5e-2), (
        "mismatch vs reference, max abs diff = %r" % float(jnp.max(jnp.abs(out - ref))))

    print("KERNEL_OK")
</pallas_src>

<mosaic_0001>
module attributes {stable_mosaic.version = 11 : i64} {
  func.func @_mha_kernel(%arg0: i32, %arg1: memref<1x8x32xf32, #tpu.memory_space<vmem>>, %arg2: memref<32x96xbf16, #tpu.memory_space<vmem>>, %arg3: memref<32x32xbf16, #tpu.memory_space<vmem>>, %arg4: memref<1x96xf32, #tpu.memory_space<vmem>>, %arg5: memref<1x32xf32, #tpu.memory_space<vmem>>, %arg6: memref<1x8x32xf32, #tpu.memory_space<vmem>>, %arg7: memref<8x32xbf16, #tpu.memory_space<vmem>>) attributes {dimension_semantics = [#tpu.dimension_semantics<parallel>], iteration_bounds = array<i64: 2>, scalar_prefetch = 0 : i64, scratch_operands = 1 : i64, tpu.core_type = #tpu.core_type<tc>, window_params = [{transform_indices = @transform_0, window_bounds = array<i64: 1, 8, 32>}, {pipeline_mode = #tpu.pipeline_mode<synchronous>, transform_indices = @transform_1, window_bounds = array<i64: 32, 96>}, {pipeline_mode = #tpu.pipeline_mode<synchronous>, transform_indices = @transform_2, window_bounds = array<i64: 32, 32>}, {pipeline_mode = #tpu.pipeline_mode<synchronous>, transform_indices = @transform_3, window_bounds = array<i64: 1, 96>}, {pipeline_mode = #tpu.pipeline_mode<synchronous>, transform_indices = @transform_4, window_bounds = array<i64: 1, 32>}, {transform_indices = @transform_5, window_bounds = array<i64: 1, 8, 32>}]} {
    %c0 = arith.constant 0 : index
    %c0_0 = arith.constant 0 : index
    %c0_1 = arith.constant 0 : index
    %0 = vector.load %arg1[%c0, %c0_0, %c0_1] : memref<1x8x32xf32, #tpu.memory_space<vmem>>, vector<1x8x32xf32>
    %1 = vector.shape_cast %0 : vector<1x8x32xf32> to vector<8x32xf32>
    %2 = arith.truncf %1 : vector<8x32xf32> to vector<8x32xbf16>
    %c0_2 = arith.constant 0 : index
    %c0_3 = arith.constant 0 : index
    %3 = vector.load %arg2[%c0_2, %c0_3] : memref<32x96xbf16, #tpu.memory_space<vmem>>, vector<32x96xbf16>
    %cst = arith.constant dense<0.000000e+00> : vector<8x96xf32>
    %4 = tpu.matmul %2, %3, %cst {dimension_numbers = #tpu.dot_dimension_numbers<[1], [0], [0], [1], [0, 0, 1, 1], [], []>} : vector<8x32xbf16>, vector<32x96xbf16>, vector<8x96xf32> -> vector<8x96xf32>
    %c0_4 = arith.constant 0 : index
    %c0_5 = arith.constant 0 : index
    %5 = vector.load %arg4[%c0_4, %c0_5] : memref<1x96xf32, #tpu.memory_space<vmem>>, vector<1x96xf32>
    %6 = vector.broadcast %5 : vector<1x96xf32> to vector<8x96xf32>
    %7 = arith.addf %4, %6 : vector<8x96xf32>
    %8 = vector.extract_strided_slice %7 {offsets = [0, 0], sizes = [8, 32], strides = [1, 1]} : vector<8x96xf32> to vector<8x32xf32>
    %cst_6 = arith.constant 0.353553385 : f32
    %9 = vector.broadcast %cst_6 : f32 to vector<8x32xf32>
    %10 = arith.mulf %8, %9 : vector<8x32xf32>
    %11 = arith.truncf %10 : vector<8x32xf32> to vector<8x32xbf16>
    %12 = vector.extract_strided_slice %7 {offsets = [0, 32], sizes = [8, 32], strides = [1, 1]} : vector<8x96xf32> to vector<8x32xf32>
    %13 = arith.truncf %12 : vector<8x32xf32> to vector<8x32xbf16>
    %14 = vector.extract_strided_slice %7 {offsets = [0, 64], sizes = [8, 32], strides = [1, 1]} : vector<8x96xf32> to vector<8x32xf32>
    %15 = arith.truncf %14 : vector<8x32xf32> to vector<8x32xbf16>
    %16 = tpu.iota {dimensions = array<i32: 0>} : vector<8x8xi32>
    %17 = tpu.iota {dimensions = array<i32: 1>} : vector<8x8xi32>
    %18 = arith.cmpi sle, %17, %16 : vector<8x8xi32>
    %19 = vector.extract_strided_slice %11 {offsets = [0, 0], sizes = [8, 8], strides = [1, 1]} : vector<8x32xbf16> to vector<8x8xbf16>
    %20 = vector.extract_strided_slice %13 {offsets = [0, 0], sizes = [8, 8], strides = [1, 1]} : vector<8x32xbf16> to vector<8x8xbf16>
    %21 = vector.extract_strided_slice %15 {offsets = [0, 0], sizes = [8, 8], strides = [1, 1]} : vector<8x32xbf16> to vector<8x8xbf16>
    %cst_7 = arith.constant dense<0.000000e+00> : vector<8x8xf32>
    %22 = tpu.matmul %19, %20, %cst_7 {dimension_numbers = #tpu.dot_dimension_numbers<[1], [1], [0], [0], [0, 0, 1, 0], [], []>} : vector<8x8xbf16>, vector<8x8xbf16>, vector<8x8xf32> -> vector<8x8xf32>
    %cst_8 = arith.constant -1.000000e+30 : f32
    %23 = vector.broadcast %cst_8 : f32 to vector<8x8xf32>
    %24 = arith.select %18, %22, %23 : vector<8x8xi1>, vector<8x8xf32>
    %cst_9 = arith.constant dense<0xFF800000> : vector<8xf32>
    %25 = vector.multi_reduction <maximumf>, %24, %cst_9 [1] : vector<8x8xf32> to vector<8xf32>
    %26 = vector.shape_cast %25 : vector<8xf32> to vector<8x1xf32>
    %27 = vector.broadcast %26 : vector<8x1xf32> to vector<8x8xf32>
    %28 = arith.subf %24, %27 : vector<8x8xf32>
    %29 = math.exp %28 : vector<8x8xf32>
    %cst_10 = arith.constant dense<0.000000e+00> : vector<8xf32>
    %30 = vector.multi_reduction <add>, %29, %cst_10 [1] : vector<8x8xf32> to vector<8xf32>
    %31 = vector.shape_cast %30 : vector<8xf32> to vector<8x1xf32>
    %32 = arith.truncf %29 : vector<8x8xf32> to vector<8x8xbf16>
    %cst_11 = arith.constant dense<0.000000e+00> : vector<8x8xf32>
    %33 = tpu.matmul %32, %21, %cst_11 {dimension_numbers = #tpu.dot_dimension_numbers<[1], [0], [0], [1], [0, 0, 1, 1], [], []>} : vector<8x8xbf16>, vector<8x8xbf16>, vector<8x8xf32> -> vector<8x8xf32>
    %34 = tpu.reciprocal %31 {approx = true} : vector<8x1xf32> -> vector<8x1xf32>
    %35 = vector.broadcast %34 : vector<8x1xf32> to vector<8x8xf32>
    %36 = arith.mulf %33, %35 : vector<8x8xf32>
    %37 = arith.truncf %36 : vector<8x8xf32> to vector<8x8xbf16>
    %c0_12 = arith.constant 0 : index
    %c0_13 = arith.constant 0 : index
    %38 = vector.load %arg7[%c0_12, %c0_13] : memref<8x32xbf16, #tpu.memory_space<vmem>>, vector<8x8xbf16>
    tpu.vector_store %arg7[%c0_12, %c0_13], %37 {strides = array<i32>} : memref<8x32xbf16, #tpu.memory_space<vmem>>, vector<8x8xbf16>,
    %39 = vector.extract_strided_slice %11 {offsets = [0, 8], sizes = [8, 8], strides = [1, 1]} : vector<8x32xbf16> to vector<8x8xbf16>
    %40 = vector.extract_strided_slice %13 {offsets = [0, 8], sizes = [8, 8], strides = [1, 1]} : vector<8x32xbf16> to vector<8x8xbf16>
    %41 = vector.extract_strided_slice %15 {offsets = [0, 8], sizes = [8, 8], strides = [1, 1]} : vector<8x32xbf16> to vector<8x8xbf16>
    %cst_14 = arith.constant dense<0.000000e+00> : vector<8x8xf32>
    %42 = tpu.matmul %39, %40, %cst_14 {dimension_numbers = #tpu.dot_dimension_numbers<[1], [1], [0], [0], [0, 0, 1, 0], [], []>} : vector<8x8xbf16>, vector<8x8xbf16>, vector<8x8xf32> -> vector<8x8xf32>
    %cst_15 = arith.constant -1.000000e+30 : f32
    %43 = vector.broadcast %cst_15 : f32 to vector<8x8xf32>
    %44 = arith.select %18, %42, %43 : vector<8x8xi1>, vector<8x8xf32>
    %cst_16 = arith.constant dense<0xFF800000> : vector<8xf32>
    %45 = vector.multi_reduction <maximumf>, %44, %cst_16 [1] : vector<8x8xf32> to vector<8xf32>
    %46 = vector.shape_cast %45 : vector<8xf32> to vector<8x1xf32>
    %47 = vector.broadcast %46 : vector<8x1xf32> to vector<8x8xf32>
    %48 = arith.subf %44, %47 : vector<8x8xf32>
    %49 = math.exp %48 : vector<8x8xf32>
    %cst_17 = arith.constant dense<0.000000e+00> : vector<8xf32>
    %50 = vector.multi_reduction <add>, %49, %cst_17 [1] : vector<8x8xf32> to vector<8xf32>
    %51 = vector.shape_cast %50 : vector<8xf32> to vector<8x1xf32>
    %52 = arith.truncf %49 : vector<8x8xf32> to vector<8x8xbf16>
    %cst_18 = arith.constant dense<0.000000e+00> : vector<8x8xf32>
    %53 = tpu.matmul %52, %41, %cst_18 {dimension_numbers = #tpu.dot_dimension_numbers<[1], [0], [0], [1], [0, 0, 1, 1], [], []>} : vector<8x8xbf16>, vector<8x8xbf16>, vector<8x8xf32> -> vector<8x8xf32>
    %54 = tpu.reciprocal %51 {approx = true} : vector<8x1xf32> -> vector<8x1xf32>
    %55 = vector.broadcast %54 : vector<8x1xf32> to vector<8x8xf32>
    %56 = arith.mulf %53, %55 : vector<8x8xf32>
    %57 = arith.truncf %56 : vector<8x8xf32> to vector<8x8xbf16>
    %c0_19 = arith.constant 0 : index
    %c8 = arith.constant 8 : index
    %58 = vector.load %arg7[%c0_19, %c8] : memref<8x32xbf16, #tpu.memory_space<vmem>>, vector<8x8xbf16>
    tpu.vector_store %arg7[%c0_19, %c8], %57 {strides = array<i32>} : memref<8x32xbf16, #tpu.memory_space<vmem>>, vector<8x8xbf16>,
    %59 = vector.extract_strided_slice %11 {offsets = [0, 16], sizes = [8, 8], strides = [1, 1]} : vector<8x32xbf16> to vector<8x8xbf16>
    %60 = vector.extract_strided_slice %13 {offsets = [0, 16], sizes = [8, 8], strides = [1, 1]} : vector<8x32xbf16> to vector<8x8xbf16>
    %61 = vector.extract_strided_slice %15 {offsets = [0, 16], sizes = [8, 8], strides = [1, 1]} : vector<8x32xbf16> to vector<8x8xbf16>
    %cst_20 = arith.constant dense<0.000000e+00> : vector<8x8xf32>
    %62 = tpu.matmul %59, %60, %cst_20 {dimension_numbers = #tpu.dot_dimension_numbers<[1], [1], [0], [0], [0, 0, 1, 0], [], []>} : vector<8x8xbf16>, vector<8x8xbf16>, vector<8x8xf32> -> vector<8x8xf32>
    %cst_21 = arith.constant -1.000000e+30 : f32
    %63 = vector.broadcast %cst_21 : f32 to vector<8x8xf32>
    %64 = arith.select %18, %62, %63 : vector<8x8xi1>, vector<8x8xf32>
    %cst_22 = arith.constant dense<0xFF800000> : vector<8xf32>
    %65 = vector.multi_reduction <maximumf>, %64, %cst_22 [1] : vector<8x8xf32> to vector<8xf32>
    %66 = vector.shape_cast %65 : vector<8xf32> to vector<8x1xf32>
    %67 = vector.broadcast %66 : vector<8x1xf32> to vector<8x8xf32>
    %68 = arith.subf %64, %67 : vector<8x8xf32>
    %69 = math.exp %68 : vector<8x8xf32>
    %cst_23 = arith.constant dense<0.000000e+00> : vector<8xf32>
    %70 = vector.multi_reduction <add>, %69, %cst_23 [1] : vector<8x8xf32> to vector<8xf32>
    %71 = vector.shape_cast %70 : vector<8xf32> to vector<8x1xf32>
    %72 = arith.truncf %69 : vector<8x8xf32> to vector<8x8xbf16>
    %cst_24 = arith.constant dense<0.000000e+00> : vector<8x8xf32>
    %73 = tpu.matmul %72, %61, %cst_24 {dimension_numbers = #tpu.dot_dimension_numbers<[1], [0], [0], [1], [0, 0, 1, 1], [], []>} : vector<8x8xbf16>, vector<8x8xbf16>, vector<8x8xf32> -> vector<8x8xf32>
    %74 = tpu.reciprocal %71 {approx = true} : vector<8x1xf32> -> vector<8x1xf32>
    %75 = vector.broadcast %74 : vector<8x1xf32> to vector<8x8xf32>
    %76 = arith.mulf %73, %75 : vector<8x8xf32>
    %77 = arith.truncf %76 : vector<8x8xf32> to vector<8x8xbf16>
    %c0_25 = arith.constant 0 : index
    %c16 = arith.constant 16 : index
    %78 = vector.load %arg7[%c0_25, %c16] : memref<8x32xbf16, #tpu.memory_space<vmem>>, vector<8x8xbf16>
    tpu.vector_store %arg7[%c0_25, %c16], %77 {strides = array<i32>} : memref<8x32xbf16, #tpu.memory_space<vmem>>, vector<8x8xbf16>,
    %79 = vector.extract_strided_slice %11 {offsets = [0, 24], sizes = [8, 8], strides = [1, 1]} : vector<8x32xbf16> to vector<8x8xbf16>
    %80 = vector.extract_strided_slice %13 {offsets = [0, 24], sizes = [8, 8], strides = [1, 1]} : vector<8x32xbf16> to vector<8x8xbf16>
    %81 = vector.extract_strided_slice %15 {offsets = [0, 24], sizes = [8, 8], strides = [1, 1]} : vector<8x32xbf16> to vector<8x8xbf16>
    %cst_26 = arith.constant dense<0.000000e+00> : vector<8x8xf32>
    %82 = tpu.matmul %79, %80, %cst_26 {dimension_numbers = #tpu.dot_dimension_numbers<[1], [1], [0], [0], [0, 0, 1, 0], [], []>} : vector<8x8xbf16>, vector<8x8xbf16>, vector<8x8xf32> -> vector<8x8xf32>
    %cst_27 = arith.constant -1.000000e+30 : f32
    %83 = vector.broadcast %cst_27 : f32 to vector<8x8xf32>
    %84 = arith.select %18, %82, %83 : vector<8x8xi1>, vector<8x8xf32>
    %cst_28 = arith.constant dense<0xFF800000> : vector<8xf32>
    %85 = vector.multi_reduction <maximumf>, %84, %cst_28 [1] : vector<8x8xf32> to vector<8xf32>
    %86 = vector.shape_cast %85 : vector<8xf32> to vector<8x1xf32>
    %87 = vector.broadcast %86 : vector<8x1xf32> to vector<8x8xf32>
    %88 = arith.subf %84, %87 : vector<8x8xf32>
    %89 = math.exp %88 : vector<8x8xf32>
    %cst_29 = arith.constant dense<0.000000e+00> : vector<8xf32>
    %90 = vector.multi_reduction <add>, %89, %cst_29 [1] : vector<8x8xf32> to vector<8xf32>
    %91 = vector.shape_cast %90 : vector<8xf32> to vector<8x1xf32>
    %92 = arith.truncf %89 : vector<8x8xf32> to vector<8x8xbf16>
    %cst_30 = arith.constant dense<0.000000e+00> : vector<8x8xf32>
    %93 = tpu.matmul %92, %81, %cst_30 {dimension_numbers = #tpu.dot_dimension_numbers<[1], [0], [0], [1], [0, 0, 1, 1], [], []>} : vector<8x8xbf16>, vector<8x8xbf16>, vector<8x8xf32> -> vector<8x8xf32>
    %94 = tpu.reciprocal %91 {approx = true} : vector<8x1xf32> -> vector<8x1xf32>
    %95 = vector.broadcast %94 : vector<8x1xf32> to vector<8x8xf32>
    %96 = arith.mulf %93, %95 : vector<8x8xf32>
    %97 = arith.truncf %96 : vector<8x8xf32> to vector<8x8xbf16>
    %c0_31 = arith.constant 0 : index
    %c24 = arith.constant 24 : index
    %98 = vector.load %arg7[%c0_31, %c24] : memref<8x32xbf16, #tpu.memory_space<vmem>>, vector<8x8xbf16>
    tpu.vector_store %arg7[%c0_31, %c24], %97 {strides = array<i32>} : memref<8x32xbf16, #tpu.memory_space<vmem>>, vector<8x8xbf16>,
    %c0_32 = arith.constant 0 : index
    %c0_33 = arith.constant 0 : index
    %99 = vector.load %arg7[%c0_32, %c0_33] : memref<8x32xbf16, #tpu.memory_space<vmem>>, vector<8x32xbf16>
    %c0_34 = arith.constant 0 : index
    %c0_35 = arith.constant 0 : index
    %100 = vector.load %arg3[%c0_34, %c0_35] : memref<32x32xbf16, #tpu.memory_space<vmem>>, vector<32x32xbf16>
    %cst_36 = arith.constant dense<0.000000e+00> : vector<8x32xf32>
    %101 = tpu.matmul %99, %100, %cst_36 {dimension_numbers = #tpu.dot_dimension_numbers<[1], [0], [0], [1], [0, 0, 1, 1], [], []>} : vector<8x32xbf16>, vector<32x32xbf16>, vector<8x32xf32> -> vector<8x32xf32>
    %c0_37 = arith.constant 0 : index
    %c0_38 = arith.constant 0 : index
    %102 = vector.load %arg5[%c0_37, %c0_38] : memref<1x32xf32, #tpu.memory_space<vmem>>, vector<1x32xf32>
    %103 = vector.broadcast %102 : vector<1x32xf32> to vector<8x32xf32>
    %104 = arith.addf %101, %103 : vector<8x32xf32>
    %c0_39 = arith.constant 0 : index
    %c0_40 = arith.constant 0 : index
    %c0_41 = arith.constant 0 : index
    %105 = vector.load %arg6[%c0_39, %c0_40, %c0_41] : memref<1x8x32xf32, #tpu.memory_space<vmem>>, vector<1x8x32xf32>
    %106 = vector.shape_cast %105 : vector<1x8x32xf32> to vector<8x32xf32>
    %107 = vector.shape_cast %104 : vector<8x32xf32> to vector<1x8x32xf32>
    tpu.vector_store %arg6[%c0_39, %c0_40, %c0_41], %107 {strides = array<i32>} : memref<1x8x32xf32, #tpu.memory_space<vmem>>, vector<1x8x32xf32>,
    return
  }
  func.func @transform_0(%arg0: i32) -> (i32, i32, i32) {
    %c0_i32 = arith.constant 0 : i32
    %c0_i32_0 = arith.constant 0 : i32
    %c0_i32_1 = arith.constant 0 : i32
    return %arg0, %c0_i32, %c0_i32_0 : i32, i32, i32
  }
  func.func @transform_1(%arg0: i32) -> (i32, i32) {
    %c0_i32 = arith.constant 0 : i32
    %c0_i32_0 = arith.constant 0 : i32
    %c0_i32_1 = arith.constant 0 : i32
    return %c0_i32, %c0_i32_0 : i32, i32
  }
  func.func @transform_2(%arg0: i32) -> (i32, i32) {
    %c0_i32 = arith.constant 0 : i32
    %c0_i32_0 = arith.constant 0 : i32
    %c0_i32_1 = arith.constant 0 : i32
    return %c0_i32, %c0_i32_0 : i32, i32
  }
  func.func @transform_3(%arg0: i32) -> (i32, i32) {
    %c0_i32 = arith.constant 0 : i32
    %c0_i32_0 = arith.constant 0 : i32
    %c0_i32_1 = arith.constant 0 : i32
    return %c0_i32, %c0_i32_0 : i32, i32
  }
  func.func @transform_4(%arg0: i32) -> (i32, i32) {
    %c0_i32 = arith.constant 0 : i32
    %c0_i32_0 = arith.constant 0 : i32
    %c0_i32_1 = arith.constant 0 : i32
    return %c0_i32, %c0_i32_0 : i32, i32
  }
  func.func @transform_5(%arg0: i32) -> (i32, i32, i32) {
    %c0_i32 = arith.constant 0 : i32
    %c0_i32_0 = arith.constant 0 : i32
    %c0_i32_1 = arith.constant 0 : i32
    return %arg0, %c0_i32, %c0_i32_0 : i32, i32, i32
  }
}

</mosaic_0001>

<llo_original>
// kernel: tpu_custom_call.1
$region0: #{tpu_custom_call.1}
  #allocation0 [shape = 'u32[]', space=smem, size = 0x4, offset = 0x4, fixed_abs, tag = 'smem constant byte address 0x4 - core index']
  #allocation1 [shape = 'u32[72,128]{1,0:T(1,128)}', space=vmem, size = 0x9000, scoped, tag = 'internal scratch']
  #allocation2 [shape = 'bf16[8,32]{1,0:T(8,128)(2,1)}', space=vmem, size = 0x800, scoped, tag = 'scratch operand']
  %s0 = inlined_call_operand.hbm [shape: f32[2,8,32], index: 0, kind: input, shape index: {}]
  %s1 = inlined_call_operand.hbm [shape: bf16[32,96], index: 1, kind: input, shape index: {}]
  %s2 = inlined_call_operand.hbm [shape: bf16[32,32], index: 2, kind: input, shape index: {}]
  %s3 = inlined_call_operand.vmem [shape: f32[1,96], index: 3, kind: input, shape index: {}]
  %s4 = inlined_call_operand.vmem [shape: f32[1,32], index: 4, kind: input, shape index: {}]
  %s5 = inlined_call_operand.hbm [shape: f32[2,8,32], index: 5, kind: output, shape index: {}]
  %s6 = sld [smem:[#allocation0]]
  $region65: #{tpu_custom_call.1} parent=0
    _
  %s8 = ssub.s32 1, %s6
  %s9 = scalar_select 0, %s8, %s6
  $region1: #{tpu_custom_call.1} parent=0
    #allocation3 [shape = 'u8[8192]{0}', space=vmem, size = 0x2000, scoped, tag = 'input window, operand 0']
    #allocation4 [shape = 's32[2]{0}', space=sflag, size = 0x8, scoped, tag = 'scoped memory for tpu_custom_call.1']
    #allocation5 [shape = 's32[2]{0}', space=sflag, size = 0x8, scoped, tag = 'scoped memory for tpu_custom_call.1']
    #allocation6 [shape = 'u8[8192]{0}', space=vmem, size = 0x2000, scoped, tag = 'input window, operand 1, single buffered']
    #allocation7 [shape = 's32[1]{0}', space=sflag, size = 0x4, scoped, tag = 'scoped memory for tpu_custom_call.1']
    #allocation8 [shape = 'u8[8192]{0}', space=vmem, size = 0x2000, scoped, tag = 'input window, operand 2, single buffered']
    #allocation9 [shape = 'u8[8192]{0}', space=vmem, size = 0x2000, scoped, tag = 'output window, operand 0']
    %10 = vsyncpa [#allocation4], 0
    %s11 = scalar_lea.sflag [#allocation4], 1
    %12 = vsyncpa %s11, 0
    %13 = vsyncpa [#allocation7], 0
    %14 = vsyncpa [#allocation5], 0
    %s15 = scalar_lea.sflag [#allocation5], 1
    %16 = vsyncpa %s15, 0
    loop: start=0, step=1, limit=4
    $region2: #{tpu_custom_call.1} parent=1 // loop_pre_header
      _
    $region3: #{tpu_custom_call.1} parent=1 // loop_header
      %s18 = sphi 0, %s22
      %p19 = scmp.ge.s32.totalorder %s18, 4
      %s28 = sphi 0, %s30
      %s31 = sphi 0, %s28
      %s32 = sphi 0, %s31
      %s48 = sphi 0, %s32
      %s52 = sphi 0, %s52
      %s54 = sphi 0, %s52
      %s55 = sphi 0, %s54
      %s69 = sphi 0, %s55
      %s73 = sphi 0, %s73
      %s75 = sphi 0, %s73
      %s76 = sphi 0, %s75
      %s90 = sphi 0, %s76
      %s94 = sphi 0, %s94
      %s96 = sphi 0, %s94
      %s97 = sphi 0, %s96
      %s111 = sphi 0, %s97
      %s115 = sphi 0, %s115
      %s117 = sphi 0, %s115
      %s118 = sphi 0, %s117
      %s132 = sphi 0, %s118
      %s138 = sphi 0, %s140
      %s141 = sphi 0, %s138
      %s142 = sphi 0, %s141
      %s158 = sphi 0, %s142
    $region4: #{tpu_custom_call.1} parent=1 // loop_header_branch
      %21 = sbr.rel (%p19) target = $region8
    $region5: #{tpu_custom_call.1} parent=1 // loop_body
      %s23 = ssub.s32 %s18, 1
      %s24 = ssub.s32 %s18, 2
      %s25 = sadd.s32 %s18, 1
      %s26 = ssub.s32 %s18, %s25
      %p27 = scmp.eq.s32.totalorder %s26, 0
      %s29 = sadd.s32 %s28, 1
      %s30 = scalar_select %p27, %s28, %s29
      %p33 = pneg %p27
      %p34 = scmp.eq.s32.totalorder %s18, 1
      %p35 = por %p33, %p34
      %p36 = scmp.ne.s32.totalorder %s28, %s31
      %p37 = scmp.eq.s32.totalorder %s18, 0
      %p38 = por %p36, %p37
      %p39 = scmp.ne.s32.totalorder %s28, %s31
      %p40 = scmp.eq.s32.totalorder %s23, 1
      %p41 = por %p39, %p40
      %p42 = scmp.ne.s32.totalorder %s31, %s32
      %p43 = scmp.eq.s32.totalorder %s23, 0
      %p44 = por %p42, %p43
      %p45 = scmp.ne.s32.totalorder %s31, %s32
      %p46 = scmp.eq.s32.totalorder %s24, 1
      %p47 = por %p45, %p46
      %p49 = scmp.ne.s32.totalorder %s32, %s48
      %p50 = scmp.eq.s32.totalorder %s24, 0
      %p51 = por %p49, %p50
      %s53 = sadd.s32 %s52, 1
      %p56 = scmp.eq.s32.totalorder %s18, 1
      %p57 = scmp.ne.s32.totalorder %s52, %s54
      %p58 = scmp.eq.s32.totalorder %s18, 0
      %p59 = por %p57, %p58
      %p60 = scmp.ne.s32.totalorder %s52, %s54
      %p61 = scmp.eq.s32.totalorder %s23, 1
      %p62 = por %p60, %p61
      %p63 = scmp.ne.s32.totalorder %s54, %s55
      %p64 = scmp.eq.s32.totalorder %s23, 0
      %p65 = por %p63, %p64
      %p66 = scmp.ne.s32.totalorder %s54, %s55
      %p67 = scmp.eq.s32.totalorder %s24, 1
      %p68 = por %p66, %p67
      %p70 = scmp.ne.s32.totalorder %s55, %s69
      %p71 = scmp.eq.s32.totalorder %s24, 0
      %p72 = por %p70, %p71
      %s74 = sadd.s32 %s73, 1
      %p77 = scmp.eq.s32.totalorder %s18, 1
      %p78 = scmp.ne.s32.totalorder %s73, %s75
      %p79 = scmp.eq.s32.totalorder %s18, 0
      %p80 = por %p78, %p79
      %p81 = scmp.ne.s32.totalorder %s73, %s75
      %p82 = scmp.eq.s32.totalorder %s23, 1
      %p83 = por %p81, %p82
      %p84 = scmp.ne.s32.totalorder %s75, %s76
      %p85 = scmp.eq.s32.totalorder %s23, 0
      %p86 = por %p84, %p85
      %p87 = scmp.ne.s32.totalorder %s75, %s76
      %p88 = scmp.eq.s32.totalorder %s24, 1
      %p89 = por %p87, %p88
      %p91 = scmp.ne.s32.totalorder %s76, %s90
      %p92 = scmp.eq.s32.totalorder %s24, 0
      %p93 = por %p91, %p92
      %s95 = sadd.s32 %s94, 1
      %p98 = scmp.eq.s32.totalorder %s18, 1
      %p99 = scmp.ne.s32.totalorder %s94, %s96
      %p100 = scmp.eq.s32.totalorder %s18, 0
      %p101 = por %p99, %p100
      %p102 = scmp.ne.s32.totalorder %s94, %s96
      %p103 = scmp.eq.s32.totalorder %s23, 1
      %p104 = por %p102, %p103
      %p105 = scmp.ne.s32.totalorder %s96, %s97
      %p106 = scmp.eq.s32.totalorder %s23, 0
      %p107 = por %p105, %p106
      %p108 = scmp.ne.s32.totalorder %s96, %s97
      %p109 = scmp.eq.s32.totalorder %s24, 1
      %p110 = por %p108, %p109
      %p112 = scmp.ne.s32.totalorder %s97, %s111
      %p113 = scmp.eq.s32.totalorder %s24, 0
      %p114 = por %p112, %p113
      %s116 = sadd.s32 %s115, 1
      %p119 = scmp.eq.s32.totalorder %s18, 1
      %p120 = scmp.ne.s32.totalorder %s115, %s117
      %p121 = scmp.eq.s32.totalorder %s18, 0
      %p122 = por %p120, %p121
      %p123 = scmp.ne.s32.totalorder %s115, %s117
      %p124 = scmp.eq.s32.totalorder %s23, 1
      %p125 = por %p123, %p124
      %p126 = scmp.ne.s32.totalorder %s117, %s118
      %p127 = scmp.eq.s32.totalorder %s23, 0
      %p128 = por %p126, %p127
      %p129 = scmp.ne.s32.totalorder %s117, %s118
      %p130 = scmp.eq.s32.totalorder %s24, 1
      %p131 = por %p129, %p130
      %p133 = scmp.ne.s32.totalorder %s118, %s132
      %p134 = scmp.eq.s32.totalorder %s24, 0
      %p135 = por %p133, %p134
      %s136 = ssub.s32 %s18, %s25
      %p137 = scmp.eq.s32.totalorder %s136, 0
      %s139 = sadd.s32 %s138, 1
      %s140 = scalar_select %p137, %s138, %s139
      %p143 = pneg %p137
      %p144 = scmp.eq.s32.totalorder %s18, 1
      %p145 = por %p143, %p144
      %p146 = scmp.ne.s32.totalorder %s138, %s141
      %p147 = scmp.eq.s32.totalorder %s18, 0
      %p148 = por %p146, %p147
      %p149 = scmp.ne.s32.totalorder %s138, %s141
      %p150 = scmp.eq.s32.totalorder %s23, 1
      %p151 = por %p149, %p150
      %p152 = scmp.ne.s32.totalorder %s141, %s142
      %p153 = scmp.eq.s32.totalorder %s23, 0
      %p154 = por %p152, %p153
      %p155 = scmp.ne.s32.totalorder %s141, %s142
      %p156 = scmp.eq.s32.totalorder %s24, 1
      %p157 = por %p155, %p156
      %p159 = scmp.ne.s32.totalorder %s142, %s158
      %p160 = scmp.eq.s32.totalorder %s24, 0
      %p161 = por %p159, %p160
      %p162 = scmp.le.s32.totalorder 1, %s18
      %p163 = scmp.lt.s32.totalorder %s18, 3
      %p164 = pnand %p162, %p163
      %p165 = pneg %p164
      // Predicated region
      $region9: #{tpu_custom_call.1} parent=5 // pred_check
        _
      $region10: #{tpu_custom_call.1} parent=5 // pred_check_branch
        %167 = sbr.rel (%p164) target = $region12
      $region11: #{tpu_custom_call.1} parent=5 // pred_region
        %s168 = ssub.s32 %s18, 1
        // Predicated region
        $region13: #{tpu_custom_call.1} parent=11 // pred_check
          %p169 = pneg %p65
        $region14: #{tpu_custom_call.1} parent=11 // pred_check_branch
          %171 = sbr.rel (%p169) target = $region16
        $region15: #{tpu_custom_call.1} parent=11 // pred_region
          %173 = vsyncadd [#allocation7], 0
          %s174 = sshll.u32 %s1, 4
          %s175 = int_to_ptr.hbm [resolvable:$true] %s174
          %s176 = sshll.u32 [#allocation6], 4
          %s177 = int_to_ptr.vmem [resolvable:$true] %s176
          %182 = dma.hbm_to_vmem [thread:$0]  %s175, 256, %s177, [#allocation7], 64, 64, 4
        $region16: #{tpu_custom_call.1} parent=11 // pred_fallthru
          _
        // Predicated region
        $region17: #{tpu_custom_call.1} parent=11 // pred_check
          %p183 = pneg %p86
        $region18: #{tpu_custom_call.1} parent=11 // pred_check_branch
          %185 = sbr.rel (%p183) target = $region20
        $region19: #{tpu_custom_call.1} parent=11 // pred_region
          %187 = vsyncadd [#allocation7], 0
          %s188 = sshll.u32 %s2, 4
          %s189 = int_to_ptr.hbm [resolvable:$true] %s188
          %s190 = sshll.u32 [#allocation8], 4
          %s191 = int_to_ptr.vmem [resolvable:$true] %s190
          %196 = dma.hbm_to_vmem [thread:$0]  %s189, 256, %s191, [#allocation7], 64, 64, 4
        $region20: #{tpu_custom_call.1} parent=11 // pred_fallthru
          _
        // Predicated region
        $region21: #{tpu_custom_call.1} parent=11 // pred_check
          %p197 = pneg %p107
        $region22: #{tpu_custom_call.1} parent=11 // pred_check_branch
          %199 = sbr.rel (%p197) target = $region24
        $region23: #{tpu_custom_call.1} parent=11 // pred_region
          _
        $region24: #{tpu_custom_call.1} parent=11 // pred_fallthru
          _
        // Predicated region
        $region25: #{tpu_custom_call.1} parent=11 // pred_check
          %p200 = pneg %p128
        $region26: #{tpu_custom_call.1} parent=11 // pred_check_branch
          %202 = sbr.rel (%p200) target = $region28
        $region27: #{tpu_custom_call.1} parent=11 // pred_region
          _
        $region28: #{tpu_custom_call.1} parent=11 // pred_fallthru
          _
      $region12: #{tpu_custom_call.1} parent=5 // pred_fallthru
        _
      %p203 = scmp.lt.s32.totalorder %s18, 2
      // Predicated region
      $region29: #{tpu_custom_call.1} parent=5 // pred_check
        %p204 = pneg %p203
      $region30: #{tpu_custom_call.1} parent=5 // pred_check_branch
        %206 = sbr.rel (%p204) target = $region32
      $region31: #{tpu_custom_call.1} parent=5 // pred_region
        // Predicated region
        $region33: #{tpu_custom_call.1} parent=31 // pred_check
          %p207 = pneg %p38
        $region34: #{tpu_custom_call.1} parent=31 // pred_check_branch
          %209 = sbr.rel (%p207) target = $region36
        $region35: #{tpu_custom_call.1} parent=31 // pred_region
          %s210 = sand.u32 %s28, 1
          %s211 = scalar_lea.sflag [#allocation4], %s210
          %s212 = sand.u32 %s28, 1
          %s213 = smul.addr %s212, 8
          %s214 = scalar_lea.vmem [#allocation3], %s213
          %216 = vsyncadd %s211, 0
          %s217 = smul.addr %s18, 8
          %s218 = scalar_lea.hbm %s0, %s217
          %s220 = sshll.u32 %s218, 4
          %s221 = int_to_ptr.hbm [resolvable:$true] %s220
          %s222 = sshll.u32 %s214, 4
          %s223 = int_to_ptr.vmem [resolvable:$true] %s222
          %225 = dma.hbm_to_vmem [thread:$0]  %s221, 128, %s223, %s211
        $region36: #{tpu_custom_call.1} parent=31 // pred_fallthru
          _
      $region32: #{tpu_custom_call.1} parent=5 // pred_fallthru
        _
      %p226 = scmp.le.s32.totalorder 1, %s18
      %p227 = scmp.lt.s32.totalorder %s18, 3
      %p228 = pnand %p226, %p227
      %p229 = pneg %p228
      // Predicated region
      $region37: #{tpu_custom_call.1} parent=5 // pred_check
        _
      $region38: #{tpu_custom_call.1} parent=5 // pred_check_branch
        %231 = sbr.rel (%p228) target = $region40
      $region39: #{tpu_custom_call.1} parent=5 // pred_region
        %s232 = ssub.s32 %s18, 1
        %s233 = sand.u32 %s31, 1
        %s234 = scalar_lea.sflag [#allocation4], %s233
        %s235 = sand.u32 %s31, 1
        %s236 = smul.addr %s235, 8
        %s237 = scalar_lea.vmem [#allocation3], %s236
        // Predicated region
        $region41: #{tpu_custom_call.1} parent=39 // pred_check
          %p238 = pneg %p44
        $region42: #{tpu_custom_call.1} parent=39 // pred_check_branch
          %240 = sbr.rel (%p238) target = $region44
        $region43: #{tpu_custom_call.1} parent=39 // pred_region
          %242 = dma.done %s234, 128
        $region44: #{tpu_custom_call.1} parent=39 // pred_fallthru
          _
        // Predicated region
        $region45: #{tpu_custom_call.1} parent=39 // pred_check
          %p243 = pneg %p65
        $region46: #{tpu_custom_call.1} parent=39 // pred_check_branch
          %245 = sbr.rel (%p243) target = $region48
        $region47: #{tpu_custom_call.1} parent=39 // pred_region
          %247 = dma.done [#allocation7], 256
        $region48: #{tpu_custom_call.1} parent=39 // pred_fallthru
          _
        // Predicated region
        $region49: #{tpu_custom_call.1} parent=39 // pred_check
          %p248 = pneg %p86
        $region50: #{tpu_custom_call.1} parent=39 // pred_check_branch
          %250 = sbr.rel (%p248) target = $region52
        $region51: #{tpu_custom_call.1} parent=39 // pred_region
          %252 = dma.done [#allocation7], 256
        $region52: #{tpu_custom_call.1} parent=39 // pred_fallthru
          _
        %s253 = sand.u32 %s31, 1
        %s254 = scalar_lea.sflag [#allocation4], %s253
        %s255 = sand.u32 %s31, 1
        %s256 = smul.addr %s255, 8
        %s257 = scalar_lea.vmem [#allocation3], %s256
        %p258 = pneg %p44
        %p259 = pneg %p41
        %p260 = pneg %p65
        %p261 = pneg %p62
        %p262 = pneg %p86
        %p263 = pneg %p83
        %p264 = pneg %p107
        %p265 = pneg %p104
        %p266 = pneg %p128
        %p267 = pneg %p125
        %p268 = pneg %p154
        %p269 = pneg %p151
        %s270 = sand.u32 %s141, 1
        %s271 = scalar_lea.sflag [#allocation5], %s270
        %s272 = sand.u32 %s141, 1
        %s273 = smul.addr %s272, 8
        %s274 = scalar_lea.vmem [#allocation9], %s273
        %v276 = vld [vmem:[%s237] sm:$0xff]
        %v277 = vpack.c.bf16 %v276, %v276
        %v278 = vld [vmem:[#allocation6] sm:$0xf]
        %v279 = vld [vmem:[#allocation6 + $0x4] sm:$0xf]
        %v280 = vld [vmem:[#allocation6 + $0x8] sm:$0xf]
        %v281 = vld [vmem:[#allocation6 + $0xc] sm:$0xf]
        %v282 = vld [vmem:[%s3] sm:$0x1]
        %v284 = vperm.slane %v282, 0
        %v290 = vunpack.c.l.b16 %v278
        %v291 = vunpack.c.l.b16 %v279
        %v292 = vunpack.c.l.b16 %v280
        %v293 = vunpack.c.l.b16 %v281
        %v294 = vpack.c.b16 %v291, %v290
        %v295 = vpack.c.b16 %v293, %v292
        %vm298 = vcmask 261120
        %v300 = vsel %vm298, %v277, 0
        %302 = vmatpush.bf16.msra.mxu0 0
        %303 = vmatpush.bf16.msra.mxu0 0
        %304 = vmatpush.bf16.msra.mxu0 0
        %305 = vmatpush.bf16.msra.mxu0 0
        %306 = vmatpush.bf16.msra.mxu0 0
        %307 = vmatpush.bf16.msra.mxu0 0
        %308 = vmatpush.bf16.msra.mxu0 %v295
        %309 = vmatpush.bf16.msra.mxu0 %v294
        %310 = vmatmul.bf16.gmra.mxu0 %v300
        %v311 = vpop.f32.mrf.mxu0
        %v312 = vadd.f32 %v284, %v311
        %v313 = vpop.f32.mrf.mxu0
        %314 = vdwg.mxu0
        %v315 = vmul.f32 %v312, 0.35355338
        %v316 = vpack.c.bf16 %v315, %v315
        %v317 = vpack.c.bf16 %v312, %v312
        %v318 = vlaneseq
        %v319 = vshrl.u32 %v318, 7
        %v320 = vlaneseq
        %v321 = vand.u32 %v320, 127
        %vm322 = vcmp.le.s32.totalorder %v321, %v319
        %v324 = vunpack.c.l.b16 %v317
        %v325 = vpack.c.b16 %v324, %v324
        %326 = vrot.lane.b32.xlu0 %v325, 96
        %v327 = vpop.permute.xlu0 %326
        %vm328 = vcmask 64512
        %v330 = vsel %vm328, %v316, 0
        %v333 = vsel %vm328, %v327, 0
        %335 = vmatpush.bf16.xpose.msra.mxu0 0
        %336 = vmatpush.bf16.xpose.msra.mxu0 0
        %337 = vmatpush.bf16.xpose.msra.mxu0 0
        %338 = vmatpush.bf16.xpose.msra.mxu0 0
        %339 = vmatpush.bf16.xpose.msra.mxu0 0
        %340 = vmatpush.bf16.xpose.msra.mxu0 0
        %341 = vmatpush.bf16.xpose.msra.mxu0 0
        %342 = vmatpush.bf16.xpose.msra.mxu0 %v333
        %343 = vmatmul.bf16.gmra.mxu0 %v330
        %v344 = vpop.f32.mrf.mxu0
        %v345 = vadd.f32 0.0, %v344
        %v346 = vpop.f32.mrf.mxu0
        %347 = vdwg.mxu0
        %v348 = vsel %vm322, %v345, -1e+30
        %v349 = vsel %vm328, %v348, -inf
        %350 = vmax.xlane.f32.xlu0 %v349
        %v351 = vpop.xlane.xlu0 %350
        %v352 = vsub.f32 %v348, %v351
        %v353 = vmul.f32 %v352, 1.442695
        %v354 = vpow.pop %v353
        %v355 = vsel %vm328, %v354, 0.0
        %356 = vadd.xlane.f32.xlu0 %v355
        %v357 = vpop.xlane.xlu0 %356
        %v358 = vpack.c.bf16 %v354, %v354
        %359 = vrot.lane.b32.xlu0 %v325, 64
        %v360 = vpop.permute.xlu0 %359
        %v362 = vsel %vm328, %v358, 0
        %vm364 = vcmask 1043456
        %v366 = vsel %vm364, %v360, 0
        %368 = vmatpush.bf16.msra.mxu0 0
        %369 = vmatpush.bf16.msra.mxu0 0
        %370 = vmatpush.bf16.msra.mxu0 0
        %371 = vmatpush.bf16.msra.mxu0 0
        %372 = vmatpush.bf16.msra.mxu0 0
        %373 = vmatpush.bf16.msra.mxu0 0
        %374 = vmatpush.bf16.msra.mxu0 0
        %375 = vmatpush.bf16.msra.mxu0 %v366
        %376 = vmatmul.bf16.gmra.mxu0 %v362
        %v377 = vpop.f32.mrf.mxu0
        %v378 = vadd.f32 0.0, %v377
        %v379 = vpop.f32.mrf.mxu0
        %380 = vdwg.mxu0
        %v381 = vrcp.pop %v357
        %v382 = vmul.f32 %v378, %v381
        %v383 = vpack.c.bf16 %v382, %v382
        %vm384 = vcmask 60416
        %385 = vst.msk [vmem:[#allocation2] sm:$0xf] %vm384, %v383
        %v387 = vunpack.c.l.b16 %v316
        %v388 = vpack.c.b16 %v387, %v387
        %389 = vrot.lane.b32.xlu0 %v388, 120
        %v390 = vpop.permute.xlu0 %389
        %391 = vrot.lane.b32.xlu0 %v325, 88
        %v392 = vpop.permute.xlu0 %391
        %v394 = vsel %vm328, %v390, 0
        %v397 = vsel %vm328, %v392, 0
        %399 = vmatpush.bf16.xpose.msra.mxu0 0
        %400 = vmatpush.bf16.xpose.msra.mxu0 0
        %401 = vmatpush.bf16.xpose.msra.mxu0 0
        %402 = vmatpush.bf16.xpose.msra.mxu0 0
        %403 = vmatpush.bf16.xpose.msra.mxu0 0
        %404 = vmatpush.bf16.xpose.msra.mxu0 0
        %405 = vmatpush.bf16.xpose.msra.mxu0 0
        %406 = vmatpush.bf16.xpose.msra.mxu0 %v397
        %407 = vmatmul.bf16.gmra.mxu0 %v394
        %v408 = vpop.f32.mrf.mxu0
        %v409 = vadd.f32 0.0, %v408
        %v410 = vpop.f32.mrf.mxu0
        %411 = vdwg.mxu0
        %v412 = vsel %vm322, %v409, -1e+30
        %v413 = vsel %vm328, %v412, -inf
        %414 = vmax.xlane.f32.xlu0 %v413
        %v415 = vpop.xlane.xlu0 %414
        %v416 = vsub.f32 %v412, %v415
        %v417 = vmul.f32 %v416, 1.442695
        %v418 = vpow.pop %v417
        %v419 = vsel %vm328, %v418, 0.0
        %420 = vadd.xlane.f32.xlu0 %v419
        %v421 = vpop.xlane.xlu0 %420
        %v422 = vpack.c.bf16 %v418, %v418
        %423 = vrot.lane.b32.xlu0 %v325, 56
        %v424 = vpop.permute.xlu0 %423
        %v426 = vsel %vm328, %v422, 0
        %v429 = vsel %vm364, %v424, 0
        %431 = vmatpush.bf16.msra.mxu0 0
        %432 = vmatpush.bf16.msra.mxu0 0
        %433 = vmatpush.bf16.msra.mxu0 0
        %434 = vmatpush.bf16.msra.mxu0 0
        %435 = vmatpush.bf16.msra.mxu0 0
        %436 = vmatpush.bf16.msra.mxu0 0
        %437 = vmatpush.bf16.msra.mxu0 0
        %438 = vmatpush.bf16.msra.mxu0 %v429
        %439 = vmatmul.bf16.gmra.mxu0 %v426
        %v440 = vpop.f32.mrf.mxu0
        %v441 = vadd.f32 0.0, %v440
        %v442 = vpop.f32.mrf.mxu0
        %443 = vdwg.mxu0
        %v444 = vrcp.pop %v421
        %v445 = vmul.f32 %v441, %v444
        %v446 = vpack.c.bf16 %v445, %v445
        %448 = vrot.lane.b32.xlu0 %v446, 8
        %v449 = vpop.permute.xlu0 %448
        %vm451 = vcmask 126016
        %452 = vst.msk [vmem:[#allocation2] sm:$0xf] %vm451, %v449
        %453 = vrot.lane.b32.xlu0 %v388, 112
        %v454 = vpop.permute.xlu0 %453
        %455 = vrot.lane.b32.xlu0 %v325, 80
        %v456 = vpop.permute.xlu0 %455
        %v458 = vsel %vm328, %v454, 0
        %v461 = vsel %vm328, %v456, 0
        %463 = vmatpush.bf16.xpose.msra.mxu0 0
        %464 = vmatpush.bf16.xpose.msra.mxu0 0
        %465 = vmatpush.bf16.xpose.msra.mxu0 0
        %466 = vmatpush.bf16.xpose.msra.mxu0 0
        %467 = vmatpush.bf16.xpose.msra.mxu0 0
        %468 = vmatpush.bf16.xpose.msra.mxu0 0
        %469 = vmatpush.bf16.xpose.msra.mxu0 0
        %470 = vmatpush.bf16.xpose.msra.mxu0 %v461
        %471 = vmatmul.bf16.gmra.mxu0 %v458
        %v472 = vpop.f32.mrf.mxu0
        %v473 = vadd.f32 0.0, %v472
        %v474 = vpop.f32.mrf.mxu0
        %475 = vdwg.mxu0
        %v476 = vsel %vm322, %v473, -1e+30
        %v477 = vsel %vm328, %v476, -inf
        %478 = vmax.xlane.f32.xlu0 %v477
        %v479 = vpop.xlane.xlu0 %478
        %v480 = vsub.f32 %v476, %v479
        %v481 = vmul.f32 %v480, 1.442695
        %v482 = vpow.pop %v481
        %v483 = vsel %vm328, %v482, 0.0
        %484 = vadd.xlane.f32.xlu0 %v483
        %v485 = vpop.xlane.xlu0 %484
        %v486 = vpack.c.bf16 %v482, %v482
        %487 = vrot.lane.b32.xlu0 %v325, 48
        %v488 = vpop.permute.xlu0 %487
        %v490 = vsel %vm328, %v486, 0
        %v493 = vsel %vm364, %v488, 0
        %495 = vmatpush.bf16.msra.mxu0 0
        %496 = vmatpush.bf16.msra.mxu0 0
        %497 = vmatpush.bf16.msra.mxu0 0
        %498 = vmatpush.bf16.msra.mxu0 0
        %499 = vmatpush.bf16.msra.mxu0 0
        %500 = vmatpush.bf16.msra.mxu0 0
        %501 = vmatpush.bf16.msra.mxu0 0
        %502 = vmatpush.bf16.msra.mxu0 %v493
        %503 = vmatmul.bf16.gmra.mxu0 %v490
        %v504 = vpop.f32.mrf.mxu0
        %v505 = vadd.f32 0.0, %v504
        %v506 = vpop.f32.mrf.mxu0
        %507 = vdwg.mxu0
        %v508 = vrcp.pop %v485
        %v509 = vmul.f32 %v505, %v508
        %v510 = vpack.c.bf16 %v509, %v509
        %512 = vrot.lane.b32.xlu0 %v510, 16
        %v513 = vpop.permute.xlu0 %512
        %vm515 = vcmask 191616
        %516 = vst.msk [vmem:[#allocation2] sm:$0xf] %vm515, %v513
        %517 = vrot.lane.b32.xlu0 %v388, 104
        %v518 = vpop.permute.xlu0 %517
        %519 = vrot.lane.b32.xlu0 %v325, 72
        %v520 = vpop.permute.xlu0 %519
        %v522 = vsel %vm328, %v518, 0
        %v525 = vsel %vm328, %v520, 0
        %527 = vmatpush.bf16.xpose.msra.mxu0 0
        %528 = vmatpush.bf16.xpose.msra.mxu0 0
        %529 = vmatpush.bf16.xpose.msra.mxu0 0
        %530 = vmatpush.bf16.xpose.msra.mxu0 0
        %531 = vmatpush.bf16.xpose.msra.mxu0 0
        %532 = vmatpush.bf16.xpose.msra.mxu0 0
        %533 = vmatpush.bf16.xpose.msra.mxu0 0
        %534 = vmatpush.bf16.xpose.msra.mxu0 %v525
        %535 = vmatmul.bf16.gmra.mxu0 %v522
        %v536 = vpop.f32.mrf.mxu0
        %v537 = vadd.f32 0.0, %v536
        %v538 = vpop.f32.mrf.mxu0
        %539 = vdwg.mxu0
        %v540 = vsel %vm322, %v537, -1e+30
        %v541 = vsel %vm328, %v540, -inf
        %542 = vmax.xlane.f32.xlu0 %v541
        %v543 = vpop.xlane.xlu0 %542
        %v544 = vsub.f32 %v540, %v543
        %v545 = vmul.f32 %v544, 1.442695
        %v546 = vpow.pop %v545
        %v547 = vsel %vm328, %v546, 0.0
        %548 = vadd.xlane.f32.xlu0 %v547
        %v549 = vpop.xlane.xlu0 %548
        %v550 = vpack.c.bf16 %v546, %v546
        %551 = vrot.lane.b32.xlu0 %v325, 40
        %v552 = vpop.permute.xlu0 %551
        %v554 = vsel %vm328, %v550, 0
        %v557 = vsel %vm364, %v552, 0
        %559 = vmatpush.bf16.msra.mxu0 0
        %560 = vmatpush.bf16.msra.mxu0 0
        %561 = vmatpush.bf16.msra.mxu0 0
        %562 = vmatpush.bf16.msra.mxu0 0
        %563 = vmatpush.bf16.msra.mxu0 0
        %564 = vmatpush.bf16.msra.mxu0 0
        %565 = vmatpush.bf16.msra.mxu0 0
        %566 = vmatpush.bf16.msra.mxu0 %v557
        %567 = vmatmul.bf16.gmra.mxu0 %v554
        %v568 = vpop.f32.mrf.mxu0
        %v569 = vadd.f32 0.0, %v568
        %v570 = vpop.f32.mrf.mxu0
        %571 = vdwg.mxu0
        %v572 = vrcp.pop %v549
        %v573 = vmul.f32 %v569, %v572
        %v574 = vpack.c.bf16 %v573, %v573
        %576 = vrot.lane.b32.xlu0 %v574, 24
        %v577 = vpop.permute.xlu0 %576
        %vm579 = vcmask 257216
        %580 = vst.msk [vmem:[#allocation2] sm:$0xf] %vm579, %v577
        %v581 = vld [vmem:[#allocation2] sm:$0xf]
        %v582 = vld [vmem:[#allocation8] sm:$0xf]
        %v583 = vld [vmem:[#allocation8 + $0x4] sm:$0xf]
        %v584 = vld [vmem:[#allocation8 + $0x8] sm:$0xf]
        %v585 = vld [vmem:[#allocation8 + $0xc] sm:$0xf]
        %v586 = vld [vmem:[%s4] sm:$0x1]
        %v588 = vperm.slane %v586, 0
        %v594 = vunpack.c.l.b16 %v582
        %v595 = vunpack.c.l.b16 %v583
        %v596 = vunpack.c.l.b16 %v584
        %v597 = vunpack.c.l.b16 %v585
        %v598 = vpack.c.b16 %v595, %v594
        %v599 = vpack.c.b16 %v597, %v596
        %v603 = vsel %vm298, %v581, 0
        %605 = vmatpush.bf16.msra.mxu0 0
        %606 = vmatpush.bf16.msra.mxu0 0
        %607 = vmatpush.bf16.msra.mxu0 0
        %608 = vmatpush.bf16.msra.mxu0 0
        %609 = vmatpush.bf16.msra.mxu0 0
        %610 = vmatpush.bf16.msra.mxu0 0
        %611 = vmatpush.bf16.msra.mxu0 %v599
        %612 = vmatpush.bf16.msra.mxu0 %v598
        %613 = vmatmul.bf16.gmra.mxu0 %v603
        %v614 = vpop.f32.mrf.mxu0
        %v615 = vadd.f32 %v588, %v614
        %v616 = vpop.f32.mrf.mxu0
        %617 = vdwg.mxu0
        %618 = vst.msk [vmem:[%s274] sm:$0xff] %vm298, %v615
        %s619 = sand.u32 %s141, 1
        %s620 = scalar_lea.sflag [#allocation5], %s619
        %s621 = sand.u32 %s141, 1
        %s622 = smul.addr %s621, 8
        %s623 = scalar_lea.vmem [#allocation9], %s622
        // Predicated region
        $region53: #{tpu_custom_call.1} parent=39 // pred_check
          %p624 = pneg %p151
        $region54: #{tpu_custom_call.1} parent=39 // pred_check_branch
          %626 = sbr.rel (%p624) target = $region56
        $region55: #{tpu_custom_call.1} parent=39 // pred_region
          %628 = vsyncadd %s620, 0
          %s629 = smul.addr %s23, 8
          %s630 = scalar_lea.hbm %s5, %s629
          %s632 = sshll.u32 %s623, 4
          %s633 = int_to_ptr.vmem [resolvable:$true] %s632
          %s634 = sshll.u32 %s630, 4
          %s635 = int_to_ptr.hbm [resolvable:$true] %s634
          %637 = dma.vmem_to_hbm [thread:$0]  %s633, 128, %s635, %s620
        $region56: #{tpu_custom_call.1} parent=39 // pred_fallthru
          _
      $region40: #{tpu_custom_call.1} parent=5 // pred_fallthru
        _
      %p638 = scmp.le.s32.totalorder 2, %s18
      // Predicated region
      $region57: #{tpu_custom_call.1} parent=5 // pred_check
        %p639 = pneg %p638
      $region58: #{tpu_custom_call.1} parent=5 // pred_check_branch
        %641 = sbr.rel (%p639) target = $region60
      $region59: #{tpu_custom_call.1} parent=5 // pred_region
        %s642 = ssub.s32 %s18, 2
        // Predicated region
        $region61: #{tpu_custom_call.1} parent=59 // pred_check
          %p643 = pneg %p157
        $region62: #{tpu_custom_call.1} parent=59 // pred_check_branch
          %645 = sbr.rel (%p643) target = $region64
        $region63: #{tpu_custom_call.1} parent=59 // pred_region
          %s646 = sand.u32 %s142, 1
          %s647 = scalar_lea.sflag [#allocation5], %s646
          %s648 = sand.u32 %s142, 1
          %s649 = smul.addr %s648, 8
          %s650 = scalar_lea.vmem [#allocation9], %s649
          %652 = dma.done %s647, 128
        $region64: #{tpu_custom_call.1} parent=59 // pred_fallthru
          _
      $region60: #{tpu_custom_call.1} parent=5 // pred_fallthru
        _
    $region6: #{tpu_custom_call.1} parent=1 // loop_footer
      %s22 = sadd.s32 1, %s18
    $region7: #{tpu_custom_call.1} parent=1 // loop_footer_branch
      %17 = sbr.rel target = $region3
    $region8: #{tpu_custom_call.1} parent=1 // loop_exit
      _
    %653 = vsyncpa [#allocation4], 1
    %s654 = scalar_lea.sflag [#allocation4], 1
    %655 = vsyncpa %s654, 1
    %656 = vsyncpa [#allocation7], 1
    %657 = vsyncpa [#allocation5], 1
    %s658 = scalar_lea.sflag [#allocation5], 1
    %659 = vsyncpa %s658, 1

</llo_original>
